<compile_context>
chip_gen: v5e
topology: v5e:2x2
jax: 0.10.0
libtpu: 0.0.40
codegen_flags: <defaults>
</compile_context>

<pallas_src>
import jax
import jax.numpy as jnp
from jax.experimental import pallas as pl
from jax.experimental.pallas import tpu as pltpu


def _round_up(x, m):
    return ((x + m - 1) // m) * m


def _fused_gate_kernel(t_ref, v_ref, tw_ref, vw_ref, tbias_ref, vbias_ref,
                       ot_ref, ov_ref):
    """One batch tile, both modalities: out = x * sigmoid(sum(x*w, -1) + b)."""
    t = t_ref[...]                                    # (TB, Dp), input dtype
    v = v_ref[...]
    tw = tw_ref[...].astype(jnp.float32)              # (1, Dp) lane-dense
    vw = vw_ref[...].astype(jnp.float32)

    # Linear(feature_dim, 1) as a lane reduction (VPU mul + XLU reduce).
    t_logit = jnp.sum(t.astype(jnp.float32) * tw, axis=-1, keepdims=True)
    v_logit = jnp.sum(v.astype(jnp.float32) * vw, axis=-1, keepdims=True)

    t_gate = jax.nn.sigmoid(t_logit + tbias_ref[0])   # (TB, 1) f32, EUP
    v_gate = jax.nn.sigmoid(v_logit + vbias_ref[0])

    # expand_as + multiply: broadcast the gate across the lane (feature) axis,
    # keeping the full-tile math in the input dtype.
    ot_ref[...] = t * t_gate.astype(t.dtype)
    ov_ref[...] = v * v_gate.astype(v.dtype)


def dynamic_attention_module(text_features, visual_features, params):
    """Pallas equivalent of DynamicAttentionModule.forward."""
    B, D = text_features.shape
    assert visual_features.shape == (B, D)
    dtype = text_features.dtype
    itemsize = jnp.dtype(dtype).itemsize
    sublane = 8 * (4 // itemsize)                 # 8 for f32, 16 for bf16
    Dp = _round_up(max(D, 128), 128)              # lane-dense feature axis

    # Batch tile: target ~2 MiB per (TB, Dp) tile.  With 2 inputs + 2 outputs
    # and double-buffering that is ~16 MiB VMEM.
    target_tile_bytes = 2 * 1024 * 1024
    tile_b = max(sublane,
                 (target_tile_bytes // (Dp * itemsize)) // sublane * sublane)
    tile_b = min(tile_b, _round_up(B, sublane))
    Bp = _round_up(B, tile_b)
    grid = (Bp // tile_b,)

    def pad_feat(x):
        return jnp.pad(x, ((0, Bp - B), (0, Dp - D)))

    def pad_weight(w):                            # (1, D) -> (1, Dp), zeros
        return jnp.pad(w.astype(jnp.float32), ((0, 0), (0, Dp - D)))

    t_p = pad_feat(text_features)
    v_p = pad_feat(visual_features)
    tw_p = pad_weight(params["text_w"])
    vw_p = pad_weight(params["visual_w"])
    t_bias = params["text_b"].reshape((1,)).astype(jnp.float32)
    v_bias = params["visual_b"].reshape((1,)).astype(jnp.float32)

    feat_spec = pl.BlockSpec((tile_b, Dp), lambda i: (i, 0))
    weight_spec = pl.BlockSpec((1, Dp), lambda i: (0, 0))   # resident weight
    bias_spec = pl.BlockSpec(memory_space=pltpu.MemorySpace.SMEM)

    out_t, out_v = pl.pallas_call(
        _fused_gate_kernel,
        out_shape=(jax.ShapeDtypeStruct((Bp, Dp), dtype),
                   jax.ShapeDtypeStruct((Bp, Dp), dtype)),
        grid=grid,
        in_specs=[feat_spec, feat_spec,           # text, visual tiles
                  weight_spec, weight_spec,       # (1, Dp) lane-dense weights
                  bias_spec, bias_spec],          # scalar biases in SMEM
        out_specs=(feat_spec, feat_spec),
        compiler_params=pltpu.CompilerParams(
            dimension_semantics=("parallel",)),   # shard batch tiles over TCs
    )(t_p, v_p, tw_p, vw_p, t_bias, v_bias)

    return out_t[:B, :D], out_v[:B, :D]


def init_params(key, feature_dim):
    """Deterministic init mirroring nn.Linear(feature_dim, 1) for each branch.

    Weights are stored lane-dense as (1, feature_dim).
    """
    k1, k2, k3, k4 = jax.random.split(key, 4)
    bound = 1.0 / float(feature_dim) ** 0.5
    return {
        "text_w": jax.random.uniform(k1, (1, feature_dim), jnp.float32,
                                     -bound, bound),
        "text_b": jax.random.uniform(k2, (1,), jnp.float32, -bound, bound),
        "visual_w": jax.random.uniform(k3, (1, feature_dim), jnp.float32,
                                       -bound, bound),
        "visual_b": jax.random.uniform(k4, (1,), jnp.float32, -bound, bound),
    }


def _reference(text, visual, params):
    """Pure-JAX reference for verification."""
    t_gate = jax.nn.sigmoid(
        jnp.sum(text * params["text_w"], axis=-1, keepdims=True)
        + params["text_b"])
    v_gate = jax.nn.sigmoid(
        jnp.sum(visual * params["visual_w"], axis=-1, keepdims=True)
        + params["visual_b"])
    return text * t_gate, visual * v_gate


if __name__ == "__main__":
    batch, feature_dim = 8, 32
    key = jax.random.PRNGKey(0)
    k_text, k_vis, k_params = jax.random.split(key, 3)

    text_features = jax.random.normal(k_text, (batch, feature_dim), jnp.float32)
    visual_features = jax.random.normal(k_vis, (batch, feature_dim), jnp.float32)
    params = init_params(k_params, feature_dim)

    attended_text, attended_visuals = dynamic_attention_module(
        text_features, visual_features, params)
    jax.block_until_ready((attended_text, attended_visuals))

    ref_text, ref_vis = _reference(text_features, visual_features, params)
    assert attended_text.shape == text_features.shape
    assert attended_visuals.shape == visual_features.shape
    assert jnp.allclose(attended_text, ref_text, atol=1e-5, rtol=1e-5)
    assert jnp.allclose(attended_visuals, ref_vis, atol=1e-5, rtol=1e-5)

    print("KERNEL_OK")
</pallas_src>

<mosaic_0001>
module attributes {stable_mosaic.version = 11 : i64} {
  func.func @_fused_gate_kernel(%arg0: i32, %arg1: memref<8x128xf32, #tpu.memory_space<vmem>>, %arg2: memref<8x128xf32, #tpu.memory_space<vmem>>, %arg3: memref<1x128xf32, #tpu.memory_space<vmem>>, %arg4: memref<1x128xf32, #tpu.memory_space<vmem>>, %arg5: memref<1xf32, #tpu.memory_space<smem>>, %arg6: memref<1xf32, #tpu.memory_space<smem>>, %arg7: memref<8x128xf32, #tpu.memory_space<vmem>>, %arg8: memref<8x128xf32, #tpu.memory_space<vmem>>) attributes {dimension_semantics = [#tpu.dimension_semantics<parallel>], iteration_bounds = array<i64: 1>, scalar_prefetch = 0 : i64, scratch_operands = 0 : i64, tpu.core_type = #tpu.core_type<tc>, window_params = [{transform_indices = @transform_0, window_bounds = array<i64: 8, 128>}, {transform_indices = @transform_1, window_bounds = array<i64: 8, 128>}, {pipeline_mode = #tpu.pipeline_mode<synchronous>, transform_indices = @transform_2, window_bounds = array<i64: 1, 128>}, {pipeline_mode = #tpu.pipeline_mode<synchronous>, transform_indices = @transform_3, window_bounds = array<i64: 1, 128>}, {transform_indices = @transform_4, window_bounds = array<i64: 1>}, {transform_indices = @transform_5, window_bounds = array<i64: 1>}, {transform_indices = @transform_6, window_bounds = array<i64: 8, 128>}, {transform_indices = @transform_7, window_bounds = array<i64: 8, 128>}]} {
    %c0 = arith.constant 0 : index
    %c0_0 = arith.constant 0 : index
    %0 = vector.load %arg1[%c0, %c0_0] : memref<8x128xf32, #tpu.memory_space<vmem>>, vector<8x128xf32>
    %c0_1 = arith.constant 0 : index
    %c0_2 = arith.constant 0 : index
    %1 = vector.load %arg2[%c0_1, %c0_2] : memref<8x128xf32, #tpu.memory_space<vmem>>, vector<8x128xf32>
    %c0_3 = arith.constant 0 : index
    %c0_4 = arith.constant 0 : index
    %2 = vector.load %arg3[%c0_3, %c0_4] : memref<1x128xf32, #tpu.memory_space<vmem>>, vector<1x128xf32>
    %c0_5 = arith.constant 0 : index
    %c0_6 = arith.constant 0 : index
    %3 = vector.load %arg4[%c0_5, %c0_6] : memref<1x128xf32, #tpu.memory_space<vmem>>, vector<1x128xf32>
    %4 = vector.broadcast %2 : vector<1x128xf32> to vector<8x128xf32>
    %5 = arith.mulf %0, %4 : vector<8x128xf32>
    %cst = arith.constant dense<0.000000e+00> : vector<8xf32>
    %6 = vector.multi_reduction <add>, %5, %cst [1] : vector<8x128xf32> to vector<8xf32>
    %7 = vector.shape_cast %6 : vector<8xf32> to vector<8x1xf32>
    %8 = vector.broadcast %3 : vector<1x128xf32> to vector<8x128xf32>
    %9 = arith.mulf %1, %8 : vector<8x128xf32>
    %cst_7 = arith.constant dense<0.000000e+00> : vector<8xf32>
    %10 = vector.multi_reduction <add>, %9, %cst_7 [1] : vector<8x128xf32> to vector<8xf32>
    %11 = vector.shape_cast %10 : vector<8xf32> to vector<8x1xf32>
    %c0_8 = arith.constant 0 : index
    %12 = memref.load %arg5[%c0_8] : memref<1xf32, #tpu.memory_space<smem>>
    %13 = vector.broadcast %12 : f32 to vector<8x1xf32>
    %14 = arith.addf %7, %13 : vector<8x1xf32>
    %15 = arith.negf %14 : vector<8x1xf32>
    %16 = math.exp %15 : vector<8x1xf32>
    %cst_9 = arith.constant 1.000000e+00 : f32
    %17 = vector.broadcast %cst_9 : f32 to vector<8x1xf32>
    %18 = arith.addf %17, %16 : vector<8x1xf32>
    %19 = arith.divf %17, %18 : vector<8x1xf32>
    %c0_10 = arith.constant 0 : index
    %20 = memref.load %arg6[%c0_10] : memref<1xf32, #tpu.memory_space<smem>>
    %21 = vector.broadcast %20 : f32 to vector<8x1xf32>
    %22 = arith.addf %11, %21 : vector<8x1xf32>
    %23 = arith.negf %22 : vector<8x1xf32>
    %24 = math.exp %23 : vector<8x1xf32>
    %cst_11 = arith.constant 1.000000e+00 : f32
    %25 = vector.broadcast %cst_11 : f32 to vector<8x1xf32>
    %26 = arith.addf %25, %24 : vector<8x1xf32>
    %27 = arith.divf %25, %26 : vector<8x1xf32>
    %28 = vector.broadcast %19 : vector<8x1xf32> to vector<8x128xf32>
    %29 = arith.mulf %0, %28 : vector<8x128xf32>
    %c0_12 = arith.constant 0 : index
    %c0_13 = arith.constant 0 : index
    %30 = vector.load %arg7[%c0_12, %c0_13] : memref<8x128xf32, #tpu.memory_space<vmem>>, vector<8x128xf32>
    tpu.vector_store %arg7[%c0_12, %c0_13], %29 {strides = array<i32>} : memref<8x128xf32, #tpu.memory_space<vmem>>, vector<8x128xf32>,
    %31 = vector.broadcast %27 : vector<8x1xf32> to vector<8x128xf32>
    %32 = arith.mulf %1, %31 : vector<8x128xf32>
    %c0_14 = arith.constant 0 : index
    %c0_15 = arith.constant 0 : index
    %33 = vector.load %arg8[%c0_14, %c0_15] : memref<8x128xf32, #tpu.memory_space<vmem>>, vector<8x128xf32>
    tpu.vector_store %arg8[%c0_14, %c0_15], %32 {strides = array<i32>} : memref<8x128xf32, #tpu.memory_space<vmem>>, vector<8x128xf32>,
    return
  }
  func.func @transform_0(%arg0: i32) -> (i32, i32) {
    %c0_i32 = arith.constant 0 : i32
    %c0_i32_0 = arith.constant 0 : i32
    return %arg0, %c0_i32 : i32, i32
  }
  func.func @transform_1(%arg0: i32) -> (i32, i32) {
    %c0_i32 = arith.constant 0 : i32
    %c0_i32_0 = arith.constant 0 : i32
    return %arg0, %c0_i32 : i32, i32
  }
  func.func @transform_2(%arg0: i32) -> (i32, i32) {
    %c0_i32 = arith.constant 0 : i32
    %c0_i32_0 = arith.constant 0 : i32
    %c0_i32_1 = arith.constant 0 : i32
    return %c0_i32, %c0_i32_0 : i32, i32
  }
  func.func @transform_3(%arg0: i32) -> (i32, i32) {
    %c0_i32 = arith.constant 0 : i32
    %c0_i32_0 = arith.constant 0 : i32
    %c0_i32_1 = arith.constant 0 : i32
    return %c0_i32, %c0_i32_0 : i32, i32
  }
  func.func @transform_4(%arg0: i32) -> i32 {
    %c0_i32 = arith.constant 0 : i32
    %c0_i32_0 = arith.constant 0 : i32
    return %c0_i32 : i32
  }
  func.func @transform_5(%arg0: i32) -> i32 {
    %c0_i32 = arith.constant 0 : i32
    %c0_i32_0 = arith.constant 0 : i32
    return %c0_i32 : i32
  }
  func.func @transform_6(%arg0: i32) -> (i32, i32) {
    %c0_i32 = arith.constant 0 : i32
    %c0_i32_0 = arith.constant 0 : i32
    return %arg0, %c0_i32 : i32, i32
  }
  func.func @transform_7(%arg0: i32) -> (i32, i32) {
    %c0_i32 = arith.constant 0 : i32
    %c0_i32_0 = arith.constant 0 : i32
    return %arg0, %c0_i32 : i32, i32
  }
}

</mosaic_0001>

<llo_original>
// kernel: tpu_custom_call.1
$region0: #{tpu_custom_call.1}
  #allocation0 [shape = 'u32[]', space=smem, size = 0x4, offset = 0x4, fixed_abs, tag = 'smem constant byte address 0x4 - core index']
  #allocation1 [shape = 'u32[72,128]{1,0:T(1,128)}', space=vmem, size = 0x9000, scoped, tag = 'internal scratch']
  #allocation2 [shape = 'f32[1]{0:T(128)S(6)}', space=smem, size = 0x200, scoped, tag = 'scoped memory for tpu_custom_call.1']
  #allocation3 [shape = 'f32[1]{0:T(128)S(6)}', space=smem, size = 0x200, scoped, tag = 'scoped memory for tpu_custom_call.1']
  %s0 = inlined_call_operand.hbm [shape: f32[8,128], index: 0, kind: input, shape index: {}]
  %s1 = inlined_call_operand.hbm [shape: f32[8,128], index: 1, kind: input, shape index: {}]
  %s2 = inlined_call_operand.vmem [shape: f32[1,128], index: 2, kind: input, shape index: {}]
  %s3 = inlined_call_operand.vmem [shape: f32[1,128], index: 3, kind: input, shape index: {}]
  %s4 = inlined_call_operand.<no memory space> [shape: f32[1], index: 4, kind: input, shape index: {}]
  %s5 = inlined_call_operand.<no memory space> [shape: f32[1], index: 5, kind: input, shape index: {}]
  %s6 = inlined_call_operand.hbm [shape: f32[8,128], index: 6, kind: output, shape index: {0}]
  %s7 = inlined_call_operand.hbm [shape: f32[8,128], index: 7, kind: output, shape index: {1}]
  %8 = xla_tuple %s6, %s7
  %s9 = sld [smem:[#allocation0]]
  $region50: #{tpu_custom_call.1} parent=0
    _
  %s11 = ssub.s32 1, %s9
  %s12 = scalar_select 0, %s11, %s9
  %13 = sst [smem:[#allocation2]] %s4
  %14 = sst [smem:[#allocation3]] %s5
  $region1: #{tpu_custom_call.1} parent=0
    #allocation4 [shape = 'u8[4096]{0}', space=vmem, size = 0x1000, scoped, tag = 'input window, operand 0, single buffered']
    #allocation5 [shape = 's32[1]{0}', space=sflag, size = 0x4, scoped, tag = 'scoped memory for tpu_custom_call.1']
    #allocation6 [shape = 's32[1]{0}', space=sflag, size = 0x4, scoped, tag = 'scoped memory for tpu_custom_call.1']
    #allocation7 [shape = 'u8[4096]{0}', space=vmem, size = 0x1000, scoped, tag = 'input window, operand 1, single buffered']
    #allocation8 [shape = 's32[1]{0}', space=sflag, size = 0x4, scoped, tag = 'scoped memory for tpu_custom_call.1']
    #allocation9 [shape = 'u8[4096]{0}', space=vmem, size = 0x1000, scoped, tag = 'output window, operand 0, single buffered']
    #allocation10 [shape = 'u8[4096]{0}', space=vmem, size = 0x1000, scoped, tag = 'output window, operand 1, single buffered']
    #allocation11 [shape = 's32[1]{0}', space=sflag, size = 0x4, scoped, tag = 'scoped memory for tpu_custom_call.1']
    %15 = vsyncpa [#allocation5], 0
    %16 = vsyncpa [#allocation8], 0
    %17 = vsyncpa [#allocation6], 0
    %18 = vsyncpa [#allocation11], 0
    // Predicated region
    $region2: #{tpu_custom_call.1} parent=1 // pred_check
      _
    $region3: #{tpu_custom_call.1} parent=1 // pred_check_branch
      %20 = sbr.rel (0) target = $region5
    $region4: #{tpu_custom_call.1} parent=1 // pred_region
      %22 = vsyncadd [#allocation5], 0
      %s24 = sshll.u32 %s0, 4
      %s25 = int_to_ptr.hbm [resolvable:$true] %s24
      %s26 = sshll.u32 [#allocation4], 4
      %s27 = int_to_ptr.vmem [resolvable:$true] %s26
      %29 = dma.hbm_to_vmem [thread:$0]  %s25, 128, %s27, [#allocation5]
    $region5: #{tpu_custom_call.1} parent=1 // pred_fallthru
      _
    // Predicated region
    $region6: #{tpu_custom_call.1} parent=1 // pred_check
      _
    $region7: #{tpu_custom_call.1} parent=1 // pred_check_branch
      %31 = sbr.rel (0) target = $region9
    $region8: #{tpu_custom_call.1} parent=1 // pred_region
      %33 = vsyncadd [#allocation8], 0
      %s35 = sshll.u32 %s1, 4
      %s36 = int_to_ptr.hbm [resolvable:$true] %s35
      %s37 = sshll.u32 [#allocation7], 4
      %s38 = int_to_ptr.vmem [resolvable:$true] %s37
      %40 = dma.hbm_to_vmem [thread:$0]  %s36, 128, %s38, [#allocation8]
    $region9: #{tpu_custom_call.1} parent=1 // pred_fallthru
      _
    // Predicated region
    $region10: #{tpu_custom_call.1} parent=1 // pred_check
      _
    $region11: #{tpu_custom_call.1} parent=1 // pred_check_branch
      %42 = sbr.rel (0) target = $region13
    $region12: #{tpu_custom_call.1} parent=1 // pred_region
      _
    $region13: #{tpu_custom_call.1} parent=1 // pred_fallthru
      _
    // Predicated region
    $region14: #{tpu_custom_call.1} parent=1 // pred_check
      _
    $region15: #{tpu_custom_call.1} parent=1 // pred_check_branch
      %44 = sbr.rel (0) target = $region17
    $region16: #{tpu_custom_call.1} parent=1 // pred_region
      _
    $region17: #{tpu_custom_call.1} parent=1 // pred_fallthru
      _
    // Predicated region
    $region18: #{tpu_custom_call.1} parent=1 // pred_check
      _
    $region19: #{tpu_custom_call.1} parent=1 // pred_check_branch
      %46 = sbr.rel (0) target = $region21
    $region20: #{tpu_custom_call.1} parent=1 // pred_region
      _
    $region21: #{tpu_custom_call.1} parent=1 // pred_fallthru
      _
    // Predicated region
    $region22: #{tpu_custom_call.1} parent=1 // pred_check
      _
    $region23: #{tpu_custom_call.1} parent=1 // pred_check_branch
      %48 = sbr.rel (0) target = $region25
    $region24: #{tpu_custom_call.1} parent=1 // pred_region
      _
    $region25: #{tpu_custom_call.1} parent=1 // pred_fallthru
      _
    // Predicated region
    $region26: #{tpu_custom_call.1} parent=1 // pred_check
      _
    $region27: #{tpu_custom_call.1} parent=1 // pred_check_branch
      %50 = sbr.rel (0) target = $region29
    $region28: #{tpu_custom_call.1} parent=1 // pred_region
      %52 = dma.done [#allocation5], 128
    $region29: #{tpu_custom_call.1} parent=1 // pred_fallthru
      _
    // Predicated region
    $region30: #{tpu_custom_call.1} parent=1 // pred_check
      _
    $region31: #{tpu_custom_call.1} parent=1 // pred_check_branch
      %54 = sbr.rel (0) target = $region33
    $region32: #{tpu_custom_call.1} parent=1 // pred_region
      %56 = dma.done [#allocation8], 128
    $region33: #{tpu_custom_call.1} parent=1 // pred_fallthru
      _
    %v57 = vld [vmem:[#allocation4] sm:$0xff]
    %v58 = vld [vmem:[#allocation7] sm:$0xff]
    %v59 = vld [vmem:[%s2] sm:$0x1]
    %v60 = vld [vmem:[%s3] sm:$0x1]
    %v62 = vperm.slane %v59, 0
    %v64 = vmul.f32 %v57, %v62
    %65 = vadd.xlane.f32.xlu0 %v64
    %v66 = vpop.xlane.xlu0 %65
    %v68 = vperm.slane %v60, 0
    %v70 = vmul.f32 %v58, %v68
    %71 = vadd.xlane.f32.xlu0 %v70
    %v72 = vpop.xlane.xlu0 %71
    %s73 = sld [smem:[#allocation2]]
    %v74 = vstv %s73
    %v75 = vadd.f32 %v66, %v74
    %v76 = vxor.u32 %v75, 2147483648
    %v77 = vmul.f32 %v76, 1.442695
    %v78 = vpow.pop %v77
    %v79 = vadd.f32 %v78, 1.0
    %v80 = vrcp.pop %v79
    %v81 = vmul.f32 %v79, %v80
    %v82 = vsub.f32 1.0, %v81
    %v83 = vmul.f32 %v80, %v82
    %v84 = vadd.f32 %v80, %v83
    %vm85 = vweird.f32 %v79
    %vm86 = vweird.f32 %v80
    %vm87 = vmor %vm85, %vm86
    %v88 = vsel %vm87, %v80, %v84
    %v89 = vand.u32 2147483647, %v79
    %vm90 = vcmp.eq.f32.partialorder %v89, 8.507059e+37
    %v91 = vand.u32 %v79, 2147483648
    %v92 = vor.u32 1.1754944e-38, %v91
    %v93 = vsel %vm90, %v92, %v88
    %v94 = vmul.f32 1.0, %v93
    %s95 = sld [smem:[#allocation3]]
    %v96 = vstv %s95
    %v97 = vadd.f32 %v72, %v96
    %v98 = vxor.u32 %v97, 2147483648
    %v99 = vmul.f32 %v98, 1.442695
    %v100 = vpow.pop %v99
    %v101 = vadd.f32 %v100, 1.0
    %v102 = vrcp.pop %v101
    %v103 = vmul.f32 %v101, %v102
    %v104 = vsub.f32 1.0, %v103
    %v105 = vmul.f32 %v102, %v104
    %v106 = vadd.f32 %v102, %v105
    %vm107 = vweird.f32 %v101
    %vm108 = vweird.f32 %v102
    %vm109 = vmor %vm107, %vm108
    %v110 = vsel %vm109, %v102, %v106
    %v111 = vand.u32 2147483647, %v101
    %vm112 = vcmp.eq.f32.partialorder %v111, 8.507059e+37
    %v113 = vand.u32 %v101, 2147483648
    %v114 = vor.u32 1.1754944e-38, %v113
    %v115 = vsel %vm112, %v114, %v110
    %v116 = vmul.f32 1.0, %v115
    %v117 = vmul.f32 %v57, %v94
    %118 = vst [vmem:[#allocation9] sm:$0xff] %v117
    %v119 = vmul.f32 %v58, %v116
    %120 = vst [vmem:[#allocation10] sm:$0xff] %v119
    // Predicated region
    $region34: #{tpu_custom_call.1} parent=1 // pred_check
      _
    $region35: #{tpu_custom_call.1} parent=1 // pred_check_branch
      %122 = sbr.rel (0) target = $region37
    $region36: #{tpu_custom_call.1} parent=1 // pred_region
      %124 = vsyncadd [#allocation6], 0
      %s126 = sshll.u32 [#allocation9], 4
      %s127 = int_to_ptr.vmem [resolvable:$true] %s126
      %s128 = sshll.u32 %s6, 4
      %s129 = int_to_ptr.hbm [resolvable:$true] %s128
      %131 = dma.vmem_to_hbm [thread:$0]  %s127, 128, %s129, [#allocation6]
    $region37: #{tpu_custom_call.1} parent=1 // pred_fallthru
      _
    // Predicated region
    $region38: #{tpu_custom_call.1} parent=1 // pred_check
      _
    $region39: #{tpu_custom_call.1} parent=1 // pred_check_branch
      %133 = sbr.rel (0) target = $region41
    $region40: #{tpu_custom_call.1} parent=1 // pred_region
      %135 = vsyncadd [#allocation11], 0
      %s137 = sshll.u32 [#allocation10], 4
      %s138 = int_to_ptr.vmem [resolvable:$true] %s137
      %s139 = sshll.u32 %s7, 4
      %s140 = int_to_ptr.hbm [resolvable:$true] %s139
      %142 = dma.vmem_to_hbm [thread:$0]  %s138, 128, %s140, [#allocation11]
    $region41: #{tpu_custom_call.1} parent=1 // pred_fallthru
      _
    // Predicated region
    $region42: #{tpu_custom_call.1} parent=1 // pred_check
      _
    $region43: #{tpu_custom_call.1} parent=1 // pred_check_branch
      %144 = sbr.rel (0) target = $region45
    $region44: #{tpu_custom_call.1} parent=1 // pred_region
      %146 = dma.done [#allocation6], 128
    $region45: #{tpu_custom_call.1} parent=1 // pred_fallthru
      _
    // Predicated region
    $region46: #{tpu_custom_call.1} parent=1 // pred_check
      _
    $region47: #{tpu_custom_call.1} parent=1 // pred_check_branch
      %148 = sbr.rel (0) target = $region49
    $region48: #{tpu_custom_call.1} parent=1 // pred_region
      %150 = dma.done [#allocation11], 128
    $region49: #{tpu_custom_call.1} parent=1 // pred_fallthru
      _
    %151 = vsyncpa [#allocation5], 1
    %152 = vsyncpa [#allocation8], 1
    %153 = vsyncpa [#allocation6], 1
    %154 = vsyncpa [#allocation11], 1

</llo_original>
